<compile_context>
chip_gen: v5e
topology: v5e:2x2
jax: 0.10.0
libtpu: 0.0.40
codegen_flags: <defaults>
</compile_context>

<pallas_src>
import jax
import jax.numpy as jnp
from jax.experimental import pallas as pl
from jax.experimental.pallas import tpu as pltpu


def _round_up(x: int, m: int) -> int:
    return ((x + m - 1) // m) * m


def _pad_to(arr, shape, dtype):
    arr = arr.astype(dtype)
    if arr.shape == tuple(shape):
        return arr
    out = jnp.zeros(shape, dtype)
    return out.at[tuple(slice(0, s) for s in arr.shape)].set(arr)


def _physical_vmem_bytes() -> int:
    """Best-effort physical VMEM query; conservative (v7x, 64 MiB) fallback."""
    try:
        info = pltpu.get_tpu_info()
        v = int(getattr(info, "vmem_capacity_bytes"))
        if v > 0:
            return v
    except Exception:
        pass
    return 64 * 1024 * 1024


# ----------------------------------------------------------------------------
# Kernel 1:  S[i, j] = sum_k X[i, k] @ W[k, j]        (support = X @ W)
# grid = (node row blocks [par], out-col blocks [par], in-feature blocks [arb])
# ----------------------------------------------------------------------------
def _xw_kernel(x_ref, w_ref, s_ref, acc_ref):
    k = pl.program_id(2)

    @pl.when(k == 0)
    def _init():
        acc_ref[...] = jnp.zeros_like(acc_ref)

    acc_ref[...] += jnp.dot(x_ref[...], w_ref[...],
                            preferred_element_type=jnp.float32)

    @pl.when(k == pl.num_programs(2) - 1)
    def _finalize():
        s_ref[...] = acc_ref[...].astype(s_ref.dtype)


# ----------------------------------------------------------------------------
# Kernel 2:  Out[i, j] = sum_k A[i, k] @ S[k, j]  (+ bias[j])
# grid = (node row blocks [par], out-col blocks [par], node col blocks [arb])
# ----------------------------------------------------------------------------
def _agg_body(a_ref, s_ref, b_ref, o_ref, acc_ref):
    k = pl.program_id(2)

    @pl.when(k == 0)
    def _init():
        if b_ref is None:
            acc_ref[...] = jnp.zeros_like(acc_ref)
        else:
            # fold the bias into the accumulator init (overlaps first MXU push)
            acc_ref[...] = jnp.broadcast_to(b_ref[...], acc_ref.shape)

    acc_ref[...] += jnp.dot(a_ref[...], s_ref[...],
                            preferred_element_type=jnp.float32)

    @pl.when(k == pl.num_programs(2) - 1)
    def _finalize():
        o_ref[...] = acc_ref[...].astype(o_ref.dtype)


def _make_agg_kernel(has_bias: bool):
    if has_bias:
        def kernel(a_ref, s_ref, b_ref, o_ref, acc_ref):
            _agg_body(a_ref, s_ref, b_ref, o_ref, acc_ref)
    else:
        def kernel(a_ref, s_ref, o_ref, acc_ref):
            _agg_body(a_ref, s_ref, None, o_ref, acc_ref)
    return kernel


def gcn_forward(x, adj, weight, bias=None, *,
                compute_dtype=jnp.bfloat16, out_dtype=jnp.float32):
    """GCN layer forward: adj @ (x @ weight) + bias, as two Pallas matmul calls."""
    n, f_in = x.shape
    f_in2, f_out = weight.shape
    assert f_in == f_in2
    assert adj.shape == (n, n)

    # ---- generation-aware tile selection ----------------------------------
    phys_vmem = _physical_vmem_bytes()
    cap = int(phys_vmem * 3 // 4)                 # ~48 MiB on v7x, ~96 MiB on v5e/v6e
    base_tile = 512 if phys_vmem >= (96 << 20) else 256

    n128 = _round_up(n, 128)
    tm = min(base_tile, n128)                     # node row tile (both calls)
    # keep >= 2 row blocks when possible so the "parallel" node axis can be
    # sharded across both v7x TensorCores (harmless on 1-TC chips).
    if (n128 // tm) < 2 and n128 >= 256:
        tm = max(128, ((n128 // 2) // 128) * 128)
    n_pad = _round_up(n, tm)
    tk2 = tm                                      # node reduction tile (call 2)

    f_in_p = _round_up(f_in, 128)
    tk1 = min(base_tile, f_in_p)                  # in-feature reduction tile (call 1)
    f_in_pad = _round_up(f_in_p, tk1)

    f_out_p = _round_up(f_out, 128)               # lane-dense output columns
    tn = min(base_tile, f_out_p)                  # output-column tile (both calls)
    f_out_pad = _round_up(f_out_p, tn)

    # ---- pad + cast operands (bf16 operands, f32 MXU accumulation) --------
    x_p = _pad_to(x, (n_pad, f_in_pad), compute_dtype)
    w_p = _pad_to(weight, (f_in_pad, f_out_pad), compute_dtype)
    a_p = _pad_to(adj, (n_pad, n_pad), compute_dtype)

    csz = jnp.dtype(compute_dtype).itemsize
    osz = jnp.dtype(out_dtype).itemsize

    def _vmem_limit(est_bytes):
        slack = 2 * 1024 * 1024                   # Mosaic internal scratch headroom
        return int(min(max(2 * est_bytes + slack, 32 * 1024 * 1024), cap))

    # ---- call 1: support = X @ W  (materialized once, bf16) ---------------
    est1 = (2 * tm * tk1 * csz            # X tile, double-buffered
            + 2 * tk1 * tn * csz          # W tile, double-buffered
            + 2 * tm * tn * csz           # S output tile, double-buffered
            + tm * tn * 4)                # f32 accumulator scratch
    support = pl.pallas_call(
        _xw_kernel,
        out_shape=jax.ShapeDtypeStruct((n_pad, f_out_pad), compute_dtype),
        grid_spec=pltpu.PrefetchScalarGridSpec(
            num_scalar_prefetch=0,
            grid=(n_pad // tm, f_out_pad // tn, f_in_pad // tk1),
            in_specs=[
                pl.BlockSpec((tm, tk1), lambda i, j, k: (i, k)),    # X
                pl.BlockSpec((tk1, tn), lambda i, j, k: (k, j)),    # W
            ],
            out_specs=pl.BlockSpec((tm, tn), lambda i, j, k: (i, j)),
            scratch_shapes=[pltpu.VMEM((tm, tn), jnp.float32)],
        ),
        compiler_params=pltpu.CompilerParams(
            dimension_semantics=("parallel", "parallel", "arbitrary"),
            vmem_limit_bytes=_vmem_limit(est1),
        ),
    )(x_p, w_p)

    # ---- call 2: out = A @ support + bias ----------------------------------
    has_bias = bias is not None
    in_specs = [
        pl.BlockSpec((tm, tk2), lambda i, j, k: (i, k)),            # A
        pl.BlockSpec((tk2, tn), lambda i, j, k: (k, j)),            # S
    ]
    operands = [a_p, support]
    if has_bias:
        b_p = _pad_to(bias.reshape(1, f_out), (1, f_out_pad), jnp.float32)
        in_specs.append(pl.BlockSpec((1, tn), lambda i, j, k: (0, j)))
        operands.append(b_p)

    est2 = (2 * tm * tk2 * csz            # A tile, double-buffered
            + 2 * tk2 * tn * csz          # S tile, double-buffered
            + 2 * 8 * tn * 4              # bias tile (sublane-padded)
            + 2 * tm * tn * osz           # output tile, double-buffered
            + tm * tn * 4)                # f32 accumulator scratch
    out_padded = pl.pallas_call(
        _make_agg_kernel(has_bias),
        out_shape=jax.ShapeDtypeStruct((n_pad, f_out_pad), out_dtype),
        grid_spec=pltpu.PrefetchScalarGridSpec(
            num_scalar_prefetch=0,
            grid=(n_pad // tm, f_out_pad // tn, n_pad // tk2),
            in_specs=in_specs,
            out_specs=pl.BlockSpec((tm, tn), lambda i, j, k: (i, j)),
            scratch_shapes=[pltpu.VMEM((tm, tn), jnp.float32)],
        ),
        compiler_params=pltpu.CompilerParams(
            dimension_semantics=("parallel", "parallel", "arbitrary"),
            vmem_limit_bytes=_vmem_limit(est2),
        ),
    )(*operands)

    if (n_pad, f_out_pad) != (n, f_out):
        out_padded = out_padded[:n, :f_out]
    return out_padded


# ----------------------------------------------------------------------------
# GraphConvolution module (forward only), deterministic parameter init.
# ----------------------------------------------------------------------------
class GraphConvolution:
    def __init__(self, in_features, out_features, bias=True, *, key):
        self.in_features = in_features
        self.out_features = out_features
        self.use_bias = bias
        # torch.nn.init.kaiming_uniform_ on an (in_features, out_features)
        # tensor uses fan_in = size(1) = out_features, gain = sqrt(2)
        # -> bound = sqrt(6 / out_features).
        bound = jnp.sqrt(6.0 / out_features)
        self.weight = jax.random.uniform(
            key, (in_features, out_features), dtype=jnp.float32,
            minval=-bound, maxval=bound)
        self.bias = jnp.zeros((out_features,), jnp.float32) if bias else None

    def __call__(self, input_feature, adj):
        return gcn_forward(input_feature, adj, self.weight,
                           self.bias if self.use_bias else None)


# ----------------------------------------------------------------------------
# Self-test
# ----------------------------------------------------------------------------
if __name__ == "__main__":
    key = jax.random.PRNGKey(0)
    k_w, k_w2, k_b, k_x, k_a = jax.random.split(key, 5)

    # deliberately non-128-aligned shapes to exercise the padding path
    N = 300        # number of graph nodes
    IN_F = 130     # in_features
    OUT_F = 70     # out_features

    x = jax.random.normal(k_x, (N, IN_F), dtype=jnp.float32)

    # Simple symmetric, row-normalized dense adjacency (deterministic).
    a_raw = (jax.random.uniform(k_a, (N, N)) > 0.9).astype(jnp.float32)
    adj = a_raw + a_raw.T + jnp.eye(N, dtype=jnp.float32)
    adj = adj / jnp.sum(adj, axis=1, keepdims=True)

    def ref_forward(xx, aa, ww, bb):
        # same bf16-operand / f32-accumulate numerics as the kernels
        s = jnp.dot(xx.astype(jnp.bfloat16), ww.astype(jnp.bfloat16),
                    preferred_element_type=jnp.float32)
        o = jnp.dot(aa.astype(jnp.bfloat16),
                    s.astype(jnp.bfloat16),
                    preferred_element_type=jnp.float32)
        return o + bb if bb is not None else o

    # --- with bias (non-zero so the bias add is actually exercised) ---------
    layer = GraphConvolution(IN_F, OUT_F, bias=True, key=k_w)
    layer.bias = 0.1 * jax.random.normal(k_b, (OUT_F,), dtype=jnp.float32)

    out = jax.block_until_ready(layer(x, adj))
    assert out.shape == (N, OUT_F)

    ref_bf16 = ref_forward(x, adj, layer.weight, layer.bias)
    assert jnp.allclose(out, ref_bf16, atol=1e-3, rtol=1e-3), \
        float(jnp.max(jnp.abs(out - ref_bf16)))

    # loose check vs the pure-f32 reference (bf16 operands ~1% rel. error)
    ref_f32 = adj @ (x @ layer.weight) + layer.bias
    assert jnp.allclose(out, ref_f32, atol=5e-2, rtol=5e-2)

    # --- without bias (exercises the bias-free kernel variant) --------------
    layer_nb = GraphConvolution(IN_F, OUT_F, bias=False, key=k_w2)
    out_nb = jax.block_until_ready(layer_nb(x, adj))
    ref_nb = ref_forward(x, adj, layer_nb.weight, None)
    assert jnp.allclose(out_nb, ref_nb, atol=1e-3, rtol=1e-3)

    print("KERNEL_OK")
</pallas_src>

<mosaic_0001>
module attributes {stable_mosaic.version = 11 : i64} {
  func.func @_xw_kernel(%arg0: i32, %arg1: i32, %arg2: i32, %arg3: memref<128x256xbf16, #tpu.memory_space<vmem>>, %arg4: memref<256x128xbf16, #tpu.memory_space<vmem>>, %arg5: memref<128x128xbf16, #tpu.memory_space<vmem>>, %arg6: memref<128x128xf32, #tpu.memory_space<vmem>>) attributes {dimension_semantics = [#tpu.dimension_semantics<parallel>, #tpu.dimension_semantics<parallel>, #tpu.dimension_semantics<arbitrary>], iteration_bounds = array<i64: 3, 1, 1>, scalar_prefetch = 0 : i64, scratch_operands = 1 : i64, tpu.core_type = #tpu.core_type<tc>, window_params = [{transform_indices = @transform_0, window_bounds = array<i64: 128, 256>}, {transform_indices = @transform_1, window_bounds = array<i64: 256, 128>}, {transform_indices = @transform_2, window_bounds = array<i64: 128, 128>}]} {
    %c0_i32 = arith.constant 0 : i32
    %0 = arith.cmpi eq, %arg2, %c0_i32 : i32
    %1 = arith.extui %0 : i1 to i32
    %c0_i32_0 = arith.constant 0 : i32
    %2 = arith.cmpi ne, %1, %c0_i32_0 : i32
    scf.if %2 {
      %cst_10 = arith.constant 0.000000e+00 : f32
      %12 = vector.broadcast %cst_10 : f32 to vector<128x128xf32>
      %c0_11 = arith.constant 0 : index
      %c0_12 = arith.constant 0 : index
      %13 = vector.load %arg6[%c0_11, %c0_12] : memref<128x128xf32, #tpu.memory_space<vmem>>, vector<128x128xf32>
      tpu.vector_store %arg6[%c0_11, %c0_12], %12 {strides = array<i32>} : memref<128x128xf32, #tpu.memory_space<vmem>>, vector<128x128xf32>,
    } else {
    }
    %c0 = arith.constant 0 : index
    %c0_1 = arith.constant 0 : index
    %3 = vector.load %arg6[%c0, %c0_1] : memref<128x128xf32, #tpu.memory_space<vmem>>, vector<128x128xf32>
    %c0_2 = arith.constant 0 : index
    %c0_3 = arith.constant 0 : index
    %4 = vector.load %arg3[%c0_2, %c0_3] : memref<128x256xbf16, #tpu.memory_space<vmem>>, vector<128x256xbf16>
    %c0_4 = arith.constant 0 : index
    %c0_5 = arith.constant 0 : index
    %5 = vector.load %arg4[%c0_4, %c0_5] : memref<256x128xbf16, #tpu.memory_space<vmem>>, vector<256x128xbf16>
    %cst = arith.constant dense<0.000000e+00> : vector<128x128xf32>
    %6 = tpu.matmul %4, %5, %cst {dimension_numbers = #tpu.dot_dimension_numbers<[1], [0], [0], [1], [0, 0, 1, 1], [], []>} : vector<128x256xbf16>, vector<256x128xbf16>, vector<128x128xf32> -> vector<128x128xf32>
    %7 = arith.addf %3, %6 : vector<128x128xf32>
    %c0_6 = arith.constant 0 : index
    %c0_7 = arith.constant 0 : index
    %8 = vector.load %arg6[%c0_6, %c0_7] : memref<128x128xf32, #tpu.memory_space<vmem>>, vector<128x128xf32>
    tpu.vector_store %arg6[%c0_6, %c0_7], %7 {strides = array<i32>} : memref<128x128xf32, #tpu.memory_space<vmem>>, vector<128x128xf32>,
    %c0_i32_8 = arith.constant 0 : i32
    %9 = arith.cmpi eq, %arg2, %c0_i32_8 : i32
    %10 = arith.extui %9 : i1 to i32
    %c0_i32_9 = arith.constant 0 : i32
    %11 = arith.cmpi ne, %10, %c0_i32_9 : i32
    scf.if %11 {
      %c0_10 = arith.constant 0 : index
      %c0_11 = arith.constant 0 : index
      %12 = vector.load %arg6[%c0_10, %c0_11] : memref<128x128xf32, #tpu.memory_space<vmem>>, vector<128x128xf32>
      %13 = arith.truncf %12 : vector<128x128xf32> to vector<128x128xbf16>
      %c0_12 = arith.constant 0 : index
      %c0_13 = arith.constant 0 : index
      %14 = vector.load %arg5[%c0_12, %c0_13] : memref<128x128xbf16, #tpu.memory_space<vmem>>, vector<128x128xbf16>
      tpu.vector_store %arg5[%c0_12, %c0_13], %13 {strides = array<i32>} : memref<128x128xbf16, #tpu.memory_space<vmem>>, vector<128x128xbf16>,
    } else {
    }
    return
  }
  func.func @transform_0(%arg0: i32, %arg1: i32, %arg2: i32) -> (i32, i32) {
    %c0_i32 = arith.constant 0 : i32
    return %arg0, %arg2 : i32, i32
  }
  func.func @transform_1(%arg0: i32, %arg1: i32, %arg2: i32) -> (i32, i32) {
    %c0_i32 = arith.constant 0 : i32
    return %arg2, %arg1 : i32, i32
  }
  func.func @transform_2(%arg0: i32, %arg1: i32, %arg2: i32) -> (i32, i32) {
    %c0_i32 = arith.constant 0 : i32
    return %arg0, %arg1 : i32, i32
  }
}

</mosaic_0001>

<llo_original>
// kernel: tpu_custom_call.1
$region0: #{tpu_custom_call.1}
  #allocation0 [shape = 'u32[]', space=smem, size = 0x4, offset = 0x4, fixed_abs, tag = 'smem constant byte address 0x4 - core index']
  #allocation1 [shape = 'u32[72,128]{1,0:T(1,128)}', space=vmem, size = 0x9000, scoped, tag = 'internal scratch']
  #allocation2 [shape = 'f32[128,128]{1,0:T(8,128)}', space=vmem, size = 0x10000, scoped, tag = 'scratch operand']
  %s0 = inlined_call_operand.hbm [shape: bf16[384,256], index: 0, kind: input, shape index: {}]
  %s1 = inlined_call_operand.hbm [shape: bf16[256,128], index: 1, kind: input, shape index: {}]
  %s2 = inlined_call_operand.hbm [shape: bf16[384,128], index: 2, kind: output, shape index: {}]
  %s3 = sld [smem:[#allocation0]]
  $region57: #{tpu_custom_call.1} parent=0
    _
  %s5 = ssub.s32 1, %s3
  %s6 = scalar_select 0, %s5, %s3
  $region1: #{tpu_custom_call.1} parent=0
    #allocation3 [shape = 'u8[131072]{0}', space=vmem, size = 0x20000, scoped, tag = 'input window, operand 0']
    #allocation4 [shape = 's32[2]{0}', space=sflag, size = 0x8, scoped, tag = 'scoped memory for tpu_custom_call.1']
    #allocation5 [shape = 's32[2]{0}', space=sflag, size = 0x8, scoped, tag = 'scoped memory for tpu_custom_call.1']
    #allocation6 [shape = 'u8[65536]{0}', space=vmem, size = 0x10000, scoped, tag = 'input window, operand 1, single buffered']
    #allocation7 [shape = 's32[1]{0}', space=sflag, size = 0x4, scoped, tag = 'scoped memory for tpu_custom_call.1']
    #allocation8 [shape = 'u8[65536]{0}', space=vmem, size = 0x10000, scoped, tag = 'output window, operand 0']
    %7 = vsyncpa [#allocation4], 0
    %s8 = scalar_lea.sflag [#allocation4], 1
    %9 = vsyncpa %s8, 0
    %10 = vsyncpa [#allocation7], 0
    %11 = vsyncpa [#allocation5], 0
    %s12 = scalar_lea.sflag [#allocation5], 1
    %13 = vsyncpa %s12, 0
    loop: start=0, step=1, limit=5
    $region2: #{tpu_custom_call.1} parent=1 // loop_pre_header
      _
    $region3: #{tpu_custom_call.1} parent=1 // loop_header
      %s15 = sphi 0, %s19
      %p16 = scmp.ge.s32.totalorder %s15, 5
      %s22 = sphi 0, %s41
      %s23 = sphi 0, %s37
      %s24 = sphi 0, %s33
      %s25 = sphi 0, %s22
      %s26 = sphi 0, %s23
      %s27 = sphi 0, %s24
      %s28 = sphi 0, %s25
      %s29 = sphi 0, %s26
      %s30 = sphi 0, %s27
      %s46 = sphi 0, %s48
      %s49 = sphi 0, %s46
      %s50 = sphi 0, %s49
      %s66 = sphi 0, %s50
      %s74 = sphi 0, %s76
      %s77 = sphi 0, %s74
      %s78 = sphi 0, %s77
      %s94 = sphi 0, %s78
      %s102 = sphi 0, %s104
      %s105 = sphi 0, %s102
      %s106 = sphi 0, %s105
      %s122 = sphi 0, %s106
    $region4: #{tpu_custom_call.1} parent=1 // loop_header_branch
      %18 = sbr.rel (%p16) target = $region8
    $region5: #{tpu_custom_call.1} parent=1 // loop_body
      %s20 = ssub.s32 %s15, 1
      %s21 = ssub.s32 %s15, 2
      %s31 = sadd.s32 1, %s24
      %p32 = scmp.ge.s32.totalorder %s31, 1
      %s33 = scalar_select %p32, 0, %s31
      %s34 = sadd.s32 1, %s23
      %s35 = scalar_select %p32, %s34, %s23
      %p36 = scmp.ge.s32.totalorder %s35, 1
      %s37 = scalar_select %p36, 0, %s35
      %s38 = sadd.s32 1, %s22
      %s39 = scalar_select %p36, %s38, %s22
      %p40 = scmp.ge.s32.totalorder %s39, 3
      %s41 = scalar_select %p40, 0, %s39
      %s42 = ssub.s32 %s22, %s41
      %s43 = ssub.s32 %s24, %s33
      %s44 = sor.u32 %s42, %s43
      %p45 = scmp.eq.s32.totalorder %s44, 0
      %s47 = sadd.s32 %s46, 1
      %s48 = scalar_select %p45, %s46, %s47
      %p51 = pneg %p45
      %p52 = scmp.eq.s32.totalorder %s15, 2
      %p53 = por %p51, %p52
      %p54 = scmp.ne.s32.totalorder %s46, %s49
      %p55 = scmp.eq.s32.totalorder %s15, 0
      %p56 = por %p54, %p55
      %p57 = scmp.ne.s32.totalorder %s46, %s49
      %p58 = scmp.eq.s32.totalorder %s20, 2
      %p59 = por %p57, %p58
      %p60 = scmp.ne.s32.totalorder %s49, %s50
      %p61 = scmp.eq.s32.totalorder %s20, 0
      %p62 = por %p60, %p61
      %p63 = scmp.ne.s32.totalorder %s49, %s50
      %p64 = scmp.eq.s32.totalorder %s21, 2
      %p65 = por %p63, %p64
      %p67 = scmp.ne.s32.totalorder %s50, %s66
      %p68 = scmp.eq.s32.totalorder %s21, 0
      %p69 = por %p67, %p68
      %s70 = ssub.s32 %s24, %s33
      %s71 = ssub.s32 %s23, %s37
      %s72 = sor.u32 %s70, %s71
      %p73 = scmp.eq.s32.totalorder %s72, 0
      %s75 = sadd.s32 %s74, 1
      %s76 = scalar_select %p73, %s74, %s75
      %p79 = pneg %p73
      %p80 = scmp.eq.s32.totalorder %s15, 2
      %p81 = por %p79, %p80
      %p82 = scmp.ne.s32.totalorder %s74, %s77
      %p83 = scmp.eq.s32.totalorder %s15, 0
      %p84 = por %p82, %p83
      %p85 = scmp.ne.s32.totalorder %s74, %s77
      %p86 = scmp.eq.s32.totalorder %s20, 2
      %p87 = por %p85, %p86
      %p88 = scmp.ne.s32.totalorder %s77, %s78
      %p89 = scmp.eq.s32.totalorder %s20, 0
      %p90 = por %p88, %p89
      %p91 = scmp.ne.s32.totalorder %s77, %s78
      %p92 = scmp.eq.s32.totalorder %s21, 2
      %p93 = por %p91, %p92
      %p95 = scmp.ne.s32.totalorder %s78, %s94
      %p96 = scmp.eq.s32.totalorder %s21, 0
      %p97 = por %p95, %p96
      %s98 = ssub.s32 %s22, %s41
      %s99 = ssub.s32 %s23, %s37
      %s100 = sor.u32 %s98, %s99
      %p101 = scmp.eq.s32.totalorder %s100, 0
      %s103 = sadd.s32 %s102, 1
      %s104 = scalar_select %p101, %s102, %s103
      %p107 = pneg %p101
      %p108 = scmp.eq.s32.totalorder %s15, 2
      %p109 = por %p107, %p108
      %p110 = scmp.ne.s32.totalorder %s102, %s105
      %p111 = scmp.eq.s32.totalorder %s15, 0
      %p112 = por %p110, %p111
      %p113 = scmp.ne.s32.totalorder %s102, %s105
      %p114 = scmp.eq.s32.totalorder %s20, 2
      %p115 = por %p113, %p114
      %p116 = scmp.ne.s32.totalorder %s105, %s106
      %p117 = scmp.eq.s32.totalorder %s20, 0
      %p118 = por %p116, %p117
      %p119 = scmp.ne.s32.totalorder %s105, %s106
      %p120 = scmp.eq.s32.totalorder %s21, 2
      %p121 = por %p119, %p120
      %p123 = scmp.ne.s32.totalorder %s106, %s122
      %p124 = scmp.eq.s32.totalorder %s21, 0
      %p125 = por %p123, %p124
      %p126 = scmp.le.s32.totalorder 1, %s15
      %p127 = scmp.lt.s32.totalorder %s15, 4
      %p128 = pnand %p126, %p127
      %p129 = pneg %p128
      // Predicated region
      $region9: #{tpu_custom_call.1} parent=5 // pred_check
        _
      $region10: #{tpu_custom_call.1} parent=5 // pred_check_branch
        %131 = sbr.rel (%p128) target = $region12
      $region11: #{tpu_custom_call.1} parent=5 // pred_region
        %s132 = ssub.s32 %s15, 1
        // Predicated region
        $region13: #{tpu_custom_call.1} parent=11 // pred_check
          %p133 = pneg %p90
        $region14: #{tpu_custom_call.1} parent=11 // pred_check_branch
          %135 = sbr.rel (%p133) target = $region16
        $region15: #{tpu_custom_call.1} parent=11 // pred_region
          %s136 = smul.u32 32, %s27
          %138 = vsyncadd [#allocation7], 0
          %s139 = sadd.s32 %s26, %s136
          %s140 = smul.addr %s139, 4
          %s141 = scalar_lea.hbm %s1, %s140
          %s142 = sshll.u32 %s141, 4
          %s143 = int_to_ptr.hbm [resolvable:$true] %s142
          %s144 = sshll.u32 [#allocation6], 4
          %s145 = int_to_ptr.vmem [resolvable:$true] %s144
          %150 = dma.hbm_to_vmem [thread:$0]  %s143, 2048, %s145, [#allocation7], 64, 64, 4
        $region16: #{tpu_custom_call.1} parent=11 // pred_fallthru
          _
      $region12: #{tpu_custom_call.1} parent=5 // pred_fallthru
        _
      %p151 = scmp.lt.s32.totalorder %s15, 3
      // Predicated region
      $region17: #{tpu_custom_call.1} parent=5 // pred_check
        %p152 = pneg %p151
      $region18: #{tpu_custom_call.1} parent=5 // pred_check_branch
        %154 = sbr.rel (%p152) target = $region20
      $region19: #{tpu_custom_call.1} parent=5 // pred_region
        // Predicated region
        $region21: #{tpu_custom_call.1} parent=19 // pred_check
          %p155 = pneg %p56
        $region22: #{tpu_custom_call.1} parent=19 // pred_check_branch
          %157 = sbr.rel (%p155) target = $region24
        $region23: #{tpu_custom_call.1} parent=19 // pred_region
          %s158 = sand.u32 %s46, 1
          %s159 = scalar_lea.sflag [#allocation4], %s158
          %s160 = sand.u32 %s46, 1
          %s161 = smul.addr %s160, 128
          %s162 = scalar_lea.vmem [#allocation3], %s161
          %s163 = smul.u32 16, %s22
          %s164 = smul.u32 2, %s24
          %166 = vsyncadd %s159, 0
          %s167 = smul.addr %s163, 2
          %s168 = sadd.s32 %s164, %s167
          %s169 = smul.addr %s168, 4
          %s170 = scalar_lea.hbm %s0, %s169
          %s171 = sshll.u32 %s170, 4
          %s172 = int_to_ptr.hbm [resolvable:$true] %s171
          %s173 = sshll.u32 %s162, 4
          %s174 = int_to_ptr.vmem [resolvable:$true] %s173
          %179 = dma.hbm_to_vmem [thread:$0]  %s172, 2048, %s174, %s159, 128, 128, 8
        $region24: #{tpu_custom_call.1} parent=19 // pred_fallthru
          _
      $region20: #{tpu_custom_call.1} parent=5 // pred_fallthru
        _
      %p180 = scmp.le.s32.totalorder 1, %s15
      %p181 = scmp.lt.s32.totalorder %s15, 4
      %p182 = pnand %p180, %p181
      %p183 = pneg %p182
      // Predicated region
      $region25: #{tpu_custom_call.1} parent=5 // pred_check
        _
      $region26: #{tpu_custom_call.1} parent=5 // pred_check_branch
        %185 = sbr.rel (%p182) target = $region28
      $region27: #{tpu_custom_call.1} parent=5 // pred_region
        %s186 = ssub.s32 %s15, 1
        %s187 = sand.u32 %s49, 1
        %s188 = scalar_lea.sflag [#allocation4], %s187
        %s189 = sand.u32 %s49, 1
        %s190 = smul.addr %s189, 128
        %s191 = scalar_lea.vmem [#allocation3], %s190
        // Predicated region
        $region29: #{tpu_custom_call.1} parent=27 // pred_check
          %p192 = pneg %p62
        $region30: #{tpu_custom_call.1} parent=27 // pred_check_branch
          %194 = sbr.rel (%p192) target = $region32
        $region31: #{tpu_custom_call.1} parent=27 // pred_region
          %196 = dma.done %s188, 2048
        $region32: #{tpu_custom_call.1} parent=27 // pred_fallthru
          _
        // Predicated region
        $region33: #{tpu_custom_call.1} parent=27 // pred_check
          %p197 = pneg %p90
        $region34: #{tpu_custom_call.1} parent=27 // pred_check_branch
          %199 = sbr.rel (%p197) target = $region36
        $region35: #{tpu_custom_call.1} parent=27 // pred_region
          %201 = dma.done [#allocation7], 2048
        $region36: #{tpu_custom_call.1} parent=27 // pred_fallthru
          _
        %s202 = sand.u32 %s49, 1
        %s203 = scalar_lea.sflag [#allocation4], %s202
        %s204 = sand.u32 %s49, 1
        %s205 = smul.addr %s204, 128
        %s206 = scalar_lea.vmem [#allocation3], %s205
        %p207 = pneg %p62
        %p208 = pneg %p59
        %p209 = pneg %p90
        %p210 = pneg %p87
        %p211 = pneg %p118
        %p212 = pneg %p115
        %s213 = sand.u32 %s105, 1
        %s214 = scalar_lea.sflag [#allocation5], %s213
        %s215 = sand.u32 %s105, 1
        %s216 = smul.addr %s215, 64
        %s217 = scalar_lea.vmem [#allocation8], %s216
        %s218 = smul.u32 16, %s25
        %s219 = smul.u32 2, %s27
        %s220 = smul.u32 32, %s27
        %s221 = smul.u32 16, %s25
        %p222 = scmp.eq.s32.totalorder %s27, 0
        // Predicated region
        $region37: #{tpu_custom_call.1} parent=27 // pred_check
          %p223 = pneg %p222
        $region38: #{tpu_custom_call.1} parent=27 // pred_check_branch
          %225 = sbr.rel (%p223) target = $region40
        $region39: #{tpu_custom_call.1} parent=27 // pred_region
          %226 = vst [vmem:[#allocation2] sm:$0xff] 0.0
          %227 = vst [vmem:[#allocation2 + $0x8] sm:$0xff] 0.0
          %228 = vst [vmem:[#allocation2 + $0x10] sm:$0xff] 0.0
          %229 = vst [vmem:[#allocation2 + $0x18] sm:$0xff] 0.0
          %230 = vst [vmem:[#allocation2 + $0x20] sm:$0xff] 0.0
          %231 = vst [vmem:[#allocation2 + $0x28] sm:$0xff] 0.0
          %232 = vst [vmem:[#allocation2 + $0x30] sm:$0xff] 0.0
          %233 = vst [vmem:[#allocation2 + $0x38] sm:$0xff] 0.0
          %234 = vst [vmem:[#allocation2 + $0x40] sm:$0xff] 0.0
          %235 = vst [vmem:[#allocation2 + $0x48] sm:$0xff] 0.0
          %236 = vst [vmem:[#allocation2 + $0x50] sm:$0xff] 0.0
          %237 = vst [vmem:[#allocation2 + $0x58] sm:$0xff] 0.0
          %238 = vst [vmem:[#allocation2 + $0x60] sm:$0xff] 0.0
          %239 = vst [vmem:[#allocation2 + $0x68] sm:$0xff] 0.0
          %240 = vst [vmem:[#allocation2 + $0x70] sm:$0xff] 0.0
          %241 = vst [vmem:[#allocation2 + $0x78] sm:$0xff] 0.0
        $region40: #{tpu_custom_call.1} parent=27 // pred_fallthru
          _
        %v242 = vld [vmem:[#allocation2] sm:$0xff]
        %v243 = vld [vmem:[#allocation2 + $0x8] sm:$0xff]
        %v244 = vld [vmem:[#allocation2 + $0x10] sm:$0xff]
        %v245 = vld [vmem:[#allocation2 + $0x18] sm:$0xff]
        %v246 = vld [vmem:[#allocation2 + $0x20] sm:$0xff]
        %v247 = vld [vmem:[#allocation2 + $0x28] sm:$0xff]
        %v248 = vld [vmem:[#allocation2 + $0x30] sm:$0xff]
        %v249 = vld [vmem:[#allocation2 + $0x38] sm:$0xff]
        %v250 = vld [vmem:[#allocation2 + $0x40] sm:$0xff]
        %v251 = vld [vmem:[#allocation2 + $0x48] sm:$0xff]
        %v252 = vld [vmem:[#allocation2 + $0x50] sm:$0xff]
        %v253 = vld [vmem:[#allocation2 + $0x58] sm:$0xff]
        %v254 = vld [vmem:[#allocation2 + $0x60] sm:$0xff]
        %v255 = vld [vmem:[#allocation2 + $0x68] sm:$0xff]
        %v256 = vld [vmem:[#allocation2 + $0x70] sm:$0xff]
        %v257 = vld [vmem:[#allocation2 + $0x78] sm:$0xff]
        %v258 = vld [vmem:[%s191] sm:$0xff]
        %v259 = vld [vmem:[%s191 + $0x8] sm:$0xff]
        %v260 = vld [vmem:[%s191 + $0x10] sm:$0xff]
        %v261 = vld [vmem:[%s191 + $0x18] sm:$0xff]
        %v262 = vld [vmem:[%s191 + $0x20] sm:$0xff]
        %v263 = vld [vmem:[%s191 + $0x28] sm:$0xff]
        %v264 = vld [vmem:[%s191 + $0x30] sm:$0xff]
        %v265 = vld [vmem:[%s191 + $0x38] sm:$0xff]
        %v266 = vld [vmem:[%s191 + $0x40] sm:$0xff]
        %v267 = vld [vmem:[%s191 + $0x48] sm:$0xff]
        %v268 = vld [vmem:[%s191 + $0x50] sm:$0xff]
        %v269 = vld [vmem:[%s191 + $0x58] sm:$0xff]
        %v270 = vld [vmem:[%s191 + $0x60] sm:$0xff]
        %v271 = vld [vmem:[%s191 + $0x68] sm:$0xff]
        %v272 = vld [vmem:[%s191 + $0x70] sm:$0xff]
        %v273 = vld [vmem:[%s191 + $0x78] sm:$0xff]
        %v274 = vld [vmem:[#allocation6] sm:$0xf]
        %v275 = vld [vmem:[#allocation6 + $0x4] sm:$0xf]
        %v276 = vld [vmem:[#allocation6 + $0x8] sm:$0xf]
        %v277 = vld [vmem:[#allocation6 + $0xc] sm:$0xf]
        %v278 = vld [vmem:[#allocation6 + $0x10] sm:$0xf]
        %v279 = vld [vmem:[#allocation6 + $0x14] sm:$0xf]
        %v280 = vld [vmem:[#allocation6 + $0x18] sm:$0xf]
        %v281 = vld [vmem:[#allocation6 + $0x1c] sm:$0xf]
        %v282 = vld [vmem:[#allocation6 + $0x20] sm:$0xf]
        %v283 = vld [vmem:[#allocation6 + $0x24] sm:$0xf]
        %v284 = vld [vmem:[#allocation6 + $0x28] sm:$0xf]
        %v285 = vld [vmem:[#allocation6 + $0x2c] sm:$0xf]
        %v286 = vld [vmem:[#allocation6 + $0x30] sm:$0xf]
        %v287 = vld [vmem:[#allocation6 + $0x34] sm:$0xf]
        %v288 = vld [vmem:[#allocation6 + $0x38] sm:$0xf]
        %v289 = vld [vmem:[#allocation6 + $0x3c] sm:$0xf]
        %v290 = vld [vmem:[#allocation6 + $0x40] sm:$0xf]
        %v291 = vld [vmem:[#allocation6 + $0x44] sm:$0xf]
        %v292 = vld [vmem:[#allocation6 + $0x48] sm:$0xf]
        %v293 = vld [vmem:[#allocation6 + $0x4c] sm:$0xf]
        %v294 = vld [vmem:[#allocation6 + $0x50] sm:$0xf]
        %v295 = vld [vmem:[#allocation6 + $0x54] sm:$0xf]
        %v296 = vld [vmem:[#allocation6 + $0x58] sm:$0xf]
        %v297 = vld [vmem:[#allocation6 + $0x5c] sm:$0xf]
        %v298 = vld [vmem:[#allocation6 + $0x60] sm:$0xf]
        %v299 = vld [vmem:[#allocation6 + $0x64] sm:$0xf]
        %v300 = vld [vmem:[#allocation6 + $0x68] sm:$0xf]
        %v301 = vld [vmem:[#allocation6 + $0x6c] sm:$0xf]
        %v302 = vld [vmem:[#allocation6 + $0x70] sm:$0xf]
        %v303 = vld [vmem:[#allocation6 + $0x74] sm:$0xf]
        %v304 = vld [vmem:[#allocation6 + $0x78] sm:$0xf]
        %v305 = vld [vmem:[#allocation6 + $0x7c] sm:$0xf]
        %v322 = vunpack.c.l.b16 %v258
        %v323 = vunpack.c.h.b16 %v258
        %v324 = vunpack.c.l.b16 %v259
        %v325 = vunpack.c.h.b16 %v259
        %v326 = vunpack.c.l.b16 %v260
        %v327 = vunpack.c.h.b16 %v260
        %v328 = vunpack.c.l.b16 %v261
        %v329 = vunpack.c.h.b16 %v261
        %v330 = vunpack.c.l.b16 %v262
        %v331 = vunpack.c.h.b16 %v262
        %v332 = vunpack.c.l.b16 %v263
        %v333 = vunpack.c.h.b16 %v263
        %v334 = vunpack.c.l.b16 %v264
        %v335 = vunpack.c.h.b16 %v264
        %v336 = vunpack.c.l.b16 %v265
        %v337 = vunpack.c.h.b16 %v265
        %v338 = vunpack.c.l.b16 %v266
        %v339 = vunpack.c.h.b16 %v266
        %v340 = vunpack.c.l.b16 %v267
        %v341 = vunpack.c.h.b16 %v267
        %v342 = vunpack.c.l.b16 %v268
        %v343 = vunpack.c.h.b16 %v268
        %v344 = vunpack.c.l.b16 %v269
        %v345 = vunpack.c.h.b16 %v269
        %v346 = vunpack.c.l.b16 %v270
        %v347 = vunpack.c.h.b16 %v270
        %v348 = vunpack.c.l.b16 %v271
        %v349 = vunpack.c.h.b16 %v271
        %v350 = vunpack.c.l.b16 %v272
        %v351 = vunpack.c.h.b16 %v272
        %v352 = vunpack.c.l.b16 %v273
        %v353 = vunpack.c.h.b16 %v273
        %v354 = vpack.c.b16 %v324, %v322
        %v355 = vpack.c.b16 %v325, %v323
        %v356 = vpack.c.b16 %v328, %v326
        %v357 = vpack.c.b16 %v329, %v327
        %v358 = vpack.c.b16 %v332, %v330
        %v359 = vpack.c.b16 %v333, %v331
        %v360 = vpack.c.b16 %v336, %v334
        %v361 = vpack.c.b16 %v337, %v335
        %v362 = vpack.c.b16 %v340, %v338
        %v363 = vpack.c.b16 %v341, %v339
        %v364 = vpack.c.b16 %v344, %v342
        %v365 = vpack.c.b16 %v345, %v343
        %v366 = vpack.c.b16 %v348, %v346
        %v367 = vpack.c.b16 %v349, %v347
        %v368 = vpack.c.b16 %v352, %v350
        %v369 = vpack.c.b16 %v353, %v351
        %v418 = vunpack.c.l.b16 %v274
        %v419 = vunpack.c.l.b16 %v275
        %v420 = vunpack.c.l.b16 %v276
        %v421 = vunpack.c.l.b16 %v277
        %v422 = vunpack.c.l.b16 %v278
        %v423 = vunpack.c.l.b16 %v279
        %v424 = vunpack.c.l.b16 %v280
        %v425 = vunpack.c.l.b16 %v281
        %v426 = vunpack.c.l.b16 %v282
        %v427 = vunpack.c.l.b16 %v283
        %v428 = vunpack.c.l.b16 %v284
        %v429 = vunpack.c.l.b16 %v285
        %v430 = vunpack.c.l.b16 %v286
        %v431 = vunpack.c.l.b16 %v287
        %v432 = vunpack.c.l.b16 %v288
        %v433 = vunpack.c.l.b16 %v289
        %v434 = vunpack.c.l.b16 %v290
        %v435 = vunpack.c.l.b16 %v291
        %v436 = vunpack.c.l.b16 %v292
        %v437 = vunpack.c.l.b16 %v293
        %v438 = vunpack.c.l.b16 %v294
        %v439 = vunpack.c.l.b16 %v295
        %v440 = vunpack.c.l.b16 %v296
        %v441 = vunpack.c.l.b16 %v297
        %v442 = vunpack.c.l.b16 %v298
        %v443 = vunpack.c.l.b16 %v299
        %v444 = vunpack.c.l.b16 %v300
        %v445 = vunpack.c.l.b16 %v301
        %v446 = vunpack.c.l.b16 %v302
        %v447 = vunpack.c.l.b16 %v303
        %v448 = vunpack.c.l.b16 %v304
        %v449 = vunpack.c.l.b16 %v305
        %v450 = vpack.c.b16 %v419, %v418
        %v451 = vpack.c.b16 %v421, %v420
        %v452 = vpack.c.b16 %v423, %v422
        %v453 = vpack.c.b16 %v425, %v424
        %v454 = vpack.c.b16 %v427, %v426
        %v455 = vpack.c.b16 %v429, %v428
        %v456 = vpack.c.b16 %v431, %v430
        %v457 = vpack.c.b16 %v433, %v432
        %v458 = vpack.c.b16 %v435, %v434
        %v459 = vpack.c.b16 %v437, %v436
        %v460 = vpack.c.b16 %v439, %v438
        %v461 = vpack.c.b16 %v441, %v440
        %v462 = vpack.c.b16 %v443, %v442
        %v463 = vpack.c.b16 %v445, %v444
        %v464 = vpack.c.b16 %v447, %v446
        %v465 = vpack.c.b16 %v449, %v448
        %482 = vmatpush.bf16.msra.mxu0 %v457
        %483 = vmatpush.bf16.msra.mxu0 %v456
        %484 = vmatpush.bf16.msra.mxu0 %v455
        %485 = vmatpush.bf16.msra.mxu0 %v454
        %486 = vmatpush.bf16.msra.mxu0 %v453
        %487 = vmatpush.bf16.msra.mxu0 %v452
        %488 = vmatpush.bf16.msra.mxu0 %v451
        %489 = vmatpush.bf16.msra.mxu0 %v450
        %490 = vmatmul.bf16.gmra.mxu0 %v354
        %v491 = vpop.f32.mrf.mxu0
        %v492 = vadd.f32 0.0, %v491
        %v493 = vpop.f32.mrf.mxu0
        %v494 = vadd.f32 0.0, %v493
        %495 = vmatmul.bf16.gmra.mxu0 %v356
        %v496 = vpop.f32.mrf.mxu0
        %v497 = vadd.f32 0.0, %v496
        %v498 = vpop.f32.mrf.mxu0
        %v499 = vadd.f32 0.0, %v498
        %500 = vmatmul.bf16.gmra.mxu0 %v358
        %v501 = vpop.f32.mrf.mxu0
        %v502 = vadd.f32 0.0, %v501
        %v503 = vpop.f32.mrf.mxu0
        %v504 = vadd.f32 0.0, %v503
        %505 = vmatmul.bf16.gmra.mxu0 %v360
        %v506 = vpop.f32.mrf.mxu0
        %v507 = vadd.f32 0.0, %v506
        %v508 = vpop.f32.mrf.mxu0
        %v509 = vadd.f32 0.0, %v508
        %510 = vmatmul.bf16.gmra.mxu0 %v362
        %v511 = vpop.f32.mrf.mxu0
        %v512 = vadd.f32 0.0, %v511
        %v513 = vpop.f32.mrf.mxu0
        %v514 = vadd.f32 0.0, %v513
        %515 = vmatmul.bf16.gmra.mxu0 %v364
        %v516 = vpop.f32.mrf.mxu0
        %v517 = vadd.f32 0.0, %v516
        %v518 = vpop.f32.mrf.mxu0
        %v519 = vadd.f32 0.0, %v518
        %520 = vmatmul.bf16.gmra.mxu0 %v366
        %v521 = vpop.f32.mrf.mxu0
        %v522 = vadd.f32 0.0, %v521
        %v523 = vpop.f32.mrf.mxu0
        %v524 = vadd.f32 0.0, %v523
        %525 = vmatmul.bf16.gmra.mxu0 %v368
        %v526 = vpop.f32.mrf.mxu0
        %v527 = vadd.f32 0.0, %v526
        %v528 = vpop.f32.mrf.mxu0
        %v529 = vadd.f32 0.0, %v528
        %530 = vdwg.mxu0
        %531 = vmatpush.bf16.msra.mxu0 %v465
        %532 = vmatpush.bf16.msra.mxu0 %v464
        %533 = vmatpush.bf16.msra.mxu0 %v463
        %534 = vmatpush.bf16.msra.mxu0 %v462
        %535 = vmatpush.bf16.msra.mxu0 %v461
        %536 = vmatpush.bf16.msra.mxu0 %v460
        %537 = vmatpush.bf16.msra.mxu0 %v459
        %538 = vmatpush.bf16.msra.mxu0 %v458
        %539 = vmatmul.bf16.gmra.mxu0 %v355
        %v540 = vpop.f32.mrf.mxu0
        %v541 = vadd.f32 %v492, %v540
        %v542 = vpop.f32.mrf.mxu0
        %v543 = vadd.f32 %v494, %v542
        %544 = vmatmul.bf16.gmra.mxu0 %v357
        %v545 = vpop.f32.mrf.mxu0
        %v546 = vadd.f32 %v497, %v545
        %v547 = vpop.f32.mrf.mxu0
        %v548 = vadd.f32 %v499, %v547
        %549 = vmatmul.bf16.gmra.mxu0 %v359
        %v550 = vpop.f32.mrf.mxu0
        %v551 = vadd.f32 %v502, %v550
        %v552 = vpop.f32.mrf.mxu0
        %v553 = vadd.f32 %v504, %v552
        %554 = vmatmul.bf16.gmra.mxu0 %v361
        %v555 = vpop.f32.mrf.mxu0
        %v556 = vadd.f32 %v507, %v555
        %v557 = vpop.f32.mrf.mxu0
        %v558 = vadd.f32 %v509, %v557
        %559 = vmatmul.bf16.gmra.mxu0 %v363
        %v560 = vpop.f32.mrf.mxu0
        %v561 = vadd.f32 %v512, %v560
        %v562 = vpop.f32.mrf.mxu0
        %v563 = vadd.f32 %v514, %v562
        %564 = vmatmul.bf16.gmra.mxu0 %v365
        %v565 = vpop.f32.mrf.mxu0
        %v566 = vadd.f32 %v517, %v565
        %v567 = vpop.f32.mrf.mxu0
        %v568 = vadd.f32 %v519, %v567
        %569 = vmatmul.bf16.gmra.mxu0 %v367
        %v570 = vpop.f32.mrf.mxu0
        %v571 = vadd.f32 %v522, %v570
        %v572 = vpop.f32.mrf.mxu0
        %v573 = vadd.f32 %v524, %v572
        %574 = vmatmul.bf16.gmra.mxu0 %v369
        %v575 = vpop.f32.mrf.mxu0
        %v576 = vadd.f32 %v527, %v575
        %v577 = vpop.f32.mrf.mxu0
        %v578 = vadd.f32 %v529, %v577
        %579 = vdwg.mxu0
        %v580 = vadd.f32 %v242, %v541
        %v581 = vadd.f32 %v243, %v543
        %v582 = vadd.f32 %v244, %v546
        %v583 = vadd.f32 %v245, %v548
        %v584 = vadd.f32 %v246, %v551
        %v585 = vadd.f32 %v247, %v553
        %v586 = vadd.f32 %v248, %v556
        %v587 = vadd.f32 %v249, %v558
        %v588 = vadd.f32 %v250, %v561
        %v589 = vadd.f32 %v251, %v563
        %v590 = vadd.f32 %v252, %v566
        %v591 = vadd.f32 %v253, %v568
        %v592 = vadd.f32 %v254, %v571
        %v593 = vadd.f32 %v255, %v573
        %v594 = vadd.f32 %v256, %v576
        %v595 = vadd.f32 %v257, %v578
        %596 = vst [vmem:[#allocation2] sm:$0xff] %v580
        %597 = vst [vmem:[#allocation2 + $0x8] sm:$0xff] %v581
        %598 = vst [vmem:[#allocation2 + $0x10] sm:$0xff] %v582
        %599 = vst [vmem:[#allocation2 + $0x18] sm:$0xff] %v583
        %600 = vst [vmem:[#allocation2 + $0x20] sm:$0xff] %v584
        %601 = vst [vmem:[#allocation2 + $0x28] sm:$0xff] %v585
        %602 = vst [vmem:[#allocation2 + $0x30] sm:$0xff] %v586
        %603 = vst [vmem:[#allocation2 + $0x38] sm:$0xff] %v587
        %604 = vst [vmem:[#allocation2 + $0x40] sm:$0xff] %v588
        %605 = vst [vmem:[#allocation2 + $0x48] sm:$0xff] %v589
        %606 = vst [vmem:[#allocation2 + $0x50] sm:$0xff] %v590
        %607 = vst [vmem:[#allocation2 + $0x58] sm:$0xff] %v591
        %608 = vst [vmem:[#allocation2 + $0x60] sm:$0xff] %v592
        %609 = vst [vmem:[#allocation2 + $0x68] sm:$0xff] %v593
        %610 = vst [vmem:[#allocation2 + $0x70] sm:$0xff] %v594
        %611 = vst [vmem:[#allocation2 + $0x78] sm:$0xff] %v595
        // Predicated region
        $region41: #{tpu_custom_call.1} parent=27 // pred_check
          %p612 = pneg %p222
        $region42: #{tpu_custom_call.1} parent=27 // pred_check_branch
          %614 = sbr.rel (%p612) target = $region44
        $region43: #{tpu_custom_call.1} parent=27 // pred_region
          %v615 = vld [vmem:[#allocation2] sm:$0xff]
          %v616 = vld [vmem:[#allocation2 + $0x8] sm:$0xff]
          %v617 = vld [vmem:[#allocation2 + $0x10] sm:$0xff]
          %v618 = vld [vmem:[#allocation2 + $0x18] sm:$0xff]
          %v619 = vld [vmem:[#allocation2 + $0x20] sm:$0xff]
          %v620 = vld [vmem:[#allocation2 + $0x28] sm:$0xff]
          %v621 = vld [vmem:[#allocation2 + $0x30] sm:$0xff]
          %v622 = vld [vmem:[#allocation2 + $0x38] sm:$0xff]
          %v623 = vld [vmem:[#allocation2 + $0x40] sm:$0xff]
          %v624 = vld [vmem:[#allocation2 + $0x48] sm:$0xff]
          %v625 = vld [vmem:[#allocation2 + $0x50] sm:$0xff]
          %v626 = vld [vmem:[#allocation2 + $0x58] sm:$0xff]
          %v627 = vld [vmem:[#allocation2 + $0x60] sm:$0xff]
          %v628 = vld [vmem:[#allocation2 + $0x68] sm:$0xff]
          %v629 = vld [vmem:[#allocation2 + $0x70] sm:$0xff]
          %v630 = vld [vmem:[#allocation2 + $0x78] sm:$0xff]
          %v631 = vpack.c.bf16 %v615, %v615
          %v632 = vpack.c.bf16 %v616, %v616
          %v633 = vpack.c.bf16 %v617, %v617
          %v634 = vpack.c.bf16 %v618, %v618
          %v635 = vpack.c.bf16 %v619, %v619
          %v636 = vpack.c.bf16 %v620, %v620
          %v637 = vpack.c.bf16 %v621, %v621
          %v638 = vpack.c.bf16 %v622, %v622
          %v639 = vpack.c.bf16 %v623, %v623
          %v640 = vpack.c.bf16 %v624, %v624
          %v641 = vpack.c.bf16 %v625, %v625
          %v642 = vpack.c.bf16 %v626, %v626
          %v643 = vpack.c.bf16 %v627, %v627
          %v644 = vpack.c.bf16 %v628, %v628
          %v645 = vpack.c.bf16 %v629, %v629
          %v646 = vpack.c.bf16 %v630, %v630
          %647 = vst [vmem:[%s217] sm:$0xf] %v631
          %648 = vst [vmem:[%s217 + $0x4] sm:$0xf] %v632
          %649 = vst [vmem:[%s217 + $0x8] sm:$0xf] %v633
          %650 = vst [vmem:[%s217 + $0xc] sm:$0xf] %v634
          %651 = vst [vmem:[%s217 + $0x10] sm:$0xf] %v635
          %652 = vst [vmem:[%s217 + $0x14] sm:$0xf] %v636
          %653 = vst [vmem:[%s217 + $0x18] sm:$0xf] %v637
          %654 = vst [vmem:[%s217 + $0x1c] sm:$0xf] %v638
          %655 = vst [vmem:[%s217 + $0x20] sm:$0xf] %v639
          %656 = vst [vmem:[%s217 + $0x24] sm:$0xf] %v640
          %657 = vst [vmem:[%s217 + $0x28] sm:$0xf] %v641
          %658 = vst [vmem:[%s217 + $0x2c] sm:$0xf] %v642
          %659 = vst [vmem:[%s217 + $0x30] sm:$0xf] %v643
          %660 = vst [vmem:[%s217 + $0x34] sm:$0xf] %v644
          %661 = vst [vmem:[%s217 + $0x38] sm:$0xf] %v645
          %662 = vst [vmem:[%s217 + $0x3c] sm:$0xf] %v646
        $region44: #{tpu_custom_call.1} parent=27 // pred_fallthru
          _
        %s663 = sand.u32 %s105, 1
        %s664 = scalar_lea.sflag [#allocation5], %s663
        %s665 = sand.u32 %s105, 1
        %s666 = smul.addr %s665, 64
        %s667 = scalar_lea.vmem [#allocation8], %s666
        // Predicated region
        $region45: #{tpu_custom_call.1} parent=27 // pred_check
          %p668 = pneg %p115
        $region46: #{tpu_custom_call.1} parent=27 // pred_check_branch
          %670 = sbr.rel (%p668) target = $region48
        $region47: #{tpu_custom_call.1} parent=27 // pred_region
          %s671 = smul.u32 16, %s25
          %673 = vsyncadd %s664, 0
          %s674 = sadd.s32 %s26, %s671
          %s675 = smul.addr %s674, 4
          %s676 = scalar_lea.hbm %s2, %s675
          %s677 = sshll.u32 %s667, 4
          %s678 = int_to_ptr.vmem [resolvable:$true] %s677
          %s679 = sshll.u32 %s676, 4
          %s680 = int_to_ptr.hbm [resolvable:$true] %s679
          %685 = dma.vmem_to_hbm [thread:$0]  %s678, 1024, %s680, %s664, 64, 64, 4
        $region48: #{tpu_custom_call.1} parent=27 // pred_fallthru
          _
      $region28: #{tpu_custom_call.1} parent=5 // pred_fallthru
        _
      %p686 = scmp.le.s32.totalorder 2, %s15
      // Predicated region
      $region49: #{tpu_custom_call.1} parent=5 // pred_check
        %p687 = pneg %p686
      $region50: #{tpu_custom_call.1} parent=5 // pred_check_branch
        %689 = sbr.rel (%p687) target = $region52
      $region51: #{tpu_custom_call.1} parent=5 // pred_region
        %s690 = ssub.s32 %s15, 2
        // Predicated region
        $region53: #{tpu_custom_call.1} parent=51 // pred_check
          %p691 = pneg %p121
        $region54: #{tpu_custom_call.1} parent=51 // pred_check_branch
          %693 = sbr.rel (%p691) target = $region56
        $region55: #{tpu_custom_call.1} parent=51 // pred_region
          %s694 = sand.u32 %s106, 1
          %s695 = scalar_lea.sflag [#allocation5], %s694
          %s696 = sand.u32 %s106, 1
          %s697 = smul.addr %s696, 64
          %s698 = scalar_lea.vmem [#allocation8], %s697
          %700 = dma.done %s695, 1024
        $region56: #{tpu_custom_call.1} parent=51 // pred_fallthru
          _
      $region52: #{tpu_custom_call.1} parent=5 // pred_fallthru
        _
    $region6: #{tpu_custom_call.1} parent=1 // loop_footer
      %s19 = sadd.s32 1, %s15
    $region7: #{tpu_custom_call.1} parent=1 // loop_footer_branch
      %14 = sbr.rel target = $region3
    $region8: #{tpu_custom_call.1} parent=1 // loop_exit
      _
    %701 = vsyncpa [#allocation4], 1
    %s702 = scalar_lea.sflag [#allocation4], 1
    %703 = vsyncpa %s702, 1
    %704 = vsyncpa [#allocation7], 1
    %705 = vsyncpa [#allocation5], 1
    %s706 = scalar_lea.sflag [#allocation5], 1
    %707 = vsyncpa %s706, 1

</llo_original>
